<compile_context>
chip_gen: v7x
topology: tpu7x:2x2x1
jax: 0.10.0
libtpu: 0.0.40
codegen_flags: <defaults>
</compile_context>

<pallas_src>
import functools

import jax
import jax.numpy as jnp
from jax.experimental import pallas as pl
from jax.experimental.pallas import tpu as pltpu


def _round_up(x, m):
    return ((x + m - 1) // m) * m


_LINEAR_VMEM_BYTES = 32 * 1024 * 1024
_FLASH_VMEM_BYTES = 48 * 1024 * 1024


# ---------------------------------------------------------------------------
# Tiled linear: out = x @ w + b [+ residual]   (bf16 operands, f32 accumulate)
# ---------------------------------------------------------------------------
def _linear_kernel(*refs, has_residual):
    if has_residual:
        x_ref, w_ref, b_ref, r_ref, o_ref, acc_ref = refs
    else:
        x_ref, w_ref, b_ref, o_ref, acc_ref = refs

    @pl.when(pl.program_id(2) == 0)
    def _():
        acc_ref[...] = jnp.zeros_like(acc_ref)

    acc_ref[...] += jnp.dot(x_ref[...], w_ref[...],
                            preferred_element_type=jnp.float32)

    @pl.when(pl.program_id(2) == pl.num_programs(2) - 1)
    def _():
        out = acc_ref[...] + b_ref[...]
        if has_residual:
            out = out + r_ref[...].astype(jnp.float32)
        o_ref[...] = out.astype(o_ref.dtype)


def pallas_linear(x2d, w_t, bias, *, residual=None, out_dtype=None,
                  tm=512, tn=512, tk=512):
    """x2d:(M,K), w_t:(K,N) (transposed torch weight), bias:(N,), residual:(M,N)|None."""
    M, K = x2d.shape
    N = w_t.shape[1]
    out_dtype = x2d.dtype if out_dtype is None else out_dtype

    # bf16 operands for the MXU (f32 accumulation happens inside the kernel).
    x2d = x2d.astype(jnp.bfloat16)
    w_t = w_t.astype(jnp.bfloat16)

    tm = min(tm, _round_up(M, 8))
    tn = min(tn, _round_up(N, 128))
    tk = min(tk, _round_up(K, 128))
    Mp, Np, Kp = _round_up(M, tm), _round_up(N, tn), _round_up(K, tk)

    xp = x2d if (Mp == M and Kp == K) else jnp.pad(x2d, ((0, Mp - M), (0, Kp - K)))
    wp = w_t if (Kp == K and Np == N) else jnp.pad(w_t, ((0, Kp - K), (0, Np - N)))
    bp = bias.astype(jnp.float32)
    if Np != N:
        bp = jnp.pad(bp, (0, Np - N))
    bp = bp.reshape(1, Np)

    in_specs = [
        pl.BlockSpec((tm, tk), lambda i, j, k: (i, k)),
        pl.BlockSpec((tk, tn), lambda i, j, k: (k, j)),
        pl.BlockSpec((1, tn), lambda i, j, k: (0, j)),
    ]
    args = [xp, wp, bp]

    has_residual = residual is not None
    if has_residual:
        rp = residual
        if Mp != M or Np != N:
            rp = jnp.pad(rp, ((0, Mp - M), (0, Np - N)))
        in_specs.append(pl.BlockSpec((tm, tn), lambda i, j, k: (i, j)))
        args.append(rp)

    out = pl.pallas_call(
        functools.partial(_linear_kernel, has_residual=has_residual),
        out_shape=jax.ShapeDtypeStruct((Mp, Np), out_dtype),
        grid_spec=pltpu.PrefetchScalarGridSpec(
            num_scalar_prefetch=0,
            grid=(Mp // tm, Np // tn, Kp // tk),
            in_specs=in_specs,
            out_specs=pl.BlockSpec((tm, tn), lambda i, j, k: (i, j)),
            scratch_shapes=[pltpu.VMEM((tm, tn), jnp.float32)],
        ),
        compiler_params=pltpu.CompilerParams(
            dimension_semantics=("parallel", "parallel", "arbitrary"),
            vmem_limit_bytes=_LINEAR_VMEM_BYTES),
    )(*args)

    if Mp != M or Np != N:
        out = out[:M, :N]
    return out


# ---------------------------------------------------------------------------
# Flash attention core: kv-tiled online softmax over a packed [q|k|v] tensor
# ---------------------------------------------------------------------------
def _flash_kernel(*refs, H, dh, E, Ep, tkv, has_mask, kv_len):
    if has_mask:
        q_ref, k_ref, v_ref, msk_ref, o_ref, m_sc, l_sc, acc_sc = refs
    else:
        q_ref, k_ref, v_ref, o_ref, m_sc, l_sc, acc_sc = refs

    ki = pl.program_id(2)
    nk = pl.num_programs(2)

    @pl.when(ki == 0)
    def _():
        m_sc[...] = jnp.full_like(m_sc, -jnp.inf)
        l_sc[...] = jnp.zeros_like(l_sc)
        acc_sc[...] = jnp.zeros_like(acc_sc)

    neg = -jnp.finfo(jnp.float32).max

    # Key keep-mask row, computed once per kv tile (shared across all heads).
    keep = None
    if has_mask:
        keep = msk_ref[0] != 0                                         # (1, tkv)
    elif kv_len is not None:
        # Only reached when keys were zero-padded and there is no user mask.
        col = ki * tkv + jax.lax.broadcasted_iota(jnp.int32, (1, tkv), 1)
        keep = col < kv_len

    # Static unroll over heads: s/p temporaries stay (tq, tkv) per head
    # (bounded VMEM on v7x) and the per-head accumulator updates are dense
    # leading-index writes.  The softmax scale is already folded into Wq.
    for h in range(H):
        qh = q_ref[0, :, h * dh:(h + 1) * dh]        # (tq, dh)  bf16, pre-scaled
        kh = k_ref[0, :, h * dh:(h + 1) * dh]        # (tkv, dh) bf16
        vh = v_ref[0, :, h * dh:(h + 1) * dh]        # (tkv, dh) bf16

        # TODO(synk): a dh-major K layout ('qd,dk->qk') would avoid the
        # implicit per-step transpose of the (tkv, dh) tile.
        s = jnp.einsum('qd,kd->qk', qh, kh,
                       preferred_element_type=jnp.float32)             # (tq, tkv)
        if keep is not None:
            s = jnp.where(keep, s, neg)

        m_prev = m_sc[h]                                               # (tq, 1)
        m_new = jnp.maximum(m_prev, jnp.max(s, axis=-1, keepdims=True))
        alpha = jnp.exp(m_prev - m_new)
        p = jnp.exp(s - m_new)                                         # (tq, tkv)
        l_sc[h] = alpha * l_sc[h] + jnp.sum(p, axis=-1, keepdims=True)
        acc_sc[h] = alpha * acc_sc[h] + jnp.dot(
            p.astype(vh.dtype), vh, preferred_element_type=jnp.float32)
        m_sc[h] = m_new

    @pl.when(ki == nk - 1)
    def _():
        if dh % 128 == 0:
            # Lane-aligned heads: merge in registers -> one dense (tq, E) store.
            pieces = [
                (acc_sc[h] * pl.reciprocal(l_sc[h], approx=True)).astype(o_ref.dtype)
                for h in range(H)
            ]
            o_ref[0, :, :E] = jnp.concatenate(pieces, axis=-1)
        else:
            # TODO(synk): for dh < 128 (e.g. 64) an unaligned in-register concat
            # would give a single dense slab store; keep masked per-head stores
            # for lowering robustness.
            for h in range(H):
                inv_l = pl.reciprocal(l_sc[h], approx=True)            # EUP slot
                o_ref[0, :, h * dh:(h + 1) * dh] = (
                    acc_sc[h] * inv_l).astype(o_ref.dtype)


def pallas_flash_attention(qkv, mask, *, H, dh, E, Ep, tq=512, tkv=512):
    """qkv: (B, N, 3*Ep) bf16 packed as [q | k | v] column groups of width Ep
    (softmax scale already folded into the q projection).  mask: (B, N) bool
    (True = attend) or None.  Returns (B, N, E) bf16 with heads merged.
    Note: v7x (64 MiB VMEM) may prefer tq=256; the per-head loop already keeps
    temporaries bounded so 512 fits within the explicit VMEM limit below."""
    B, N, W = qkv.shape
    assert W == 3 * Ep

    tq = min(tq, _round_up(N, 8))
    tkv = min(tkv, _round_up(N, 8))
    Nqp = _round_up(N, tq)
    Nkp = _round_up(N, tkv)
    Nbuf = max(Nqp, Nkp)
    if Nbuf != N:
        qkv = jnp.pad(qkv, ((0, 0), (0, Nbuf - N), (0, 0)))

    has_mask = mask is not None
    kv_len = None
    args = [qkv, qkv, qkv]   # same buffer; BlockSpecs pick the q / k / v column group
    in_specs = [
        pl.BlockSpec((1, tq, Ep), lambda b, qi, ki: (b, qi, 0)),
        pl.BlockSpec((1, tkv, Ep), lambda b, qi, ki: (b, ki, 1)),
        pl.BlockSpec((1, tkv, Ep), lambda b, qi, ki: (b, ki, 2)),
    ]
    if has_mask:
        m = mask.reshape(B, 1, N).astype(jnp.int32)
        if Nkp != N:
            m = jnp.pad(m, ((0, 0), (0, 0), (0, Nkp - N)))   # padded keys -> masked
        args.append(m)
        in_specs.append(pl.BlockSpec((1, 1, tkv), lambda b, qi, ki: (b, 0, ki)))
    elif Nkp != N:
        kv_len = N   # mask-free path: padded keys handled by in-kernel iota compare

    kernel = functools.partial(_flash_kernel, H=H, dh=dh, E=E, Ep=Ep, tkv=tkv,
                               has_mask=has_mask, kv_len=kv_len)
    out = pl.pallas_call(
        kernel,
        out_shape=jax.ShapeDtypeStruct((B, Nqp, Ep), jnp.bfloat16),
        grid_spec=pltpu.PrefetchScalarGridSpec(
            num_scalar_prefetch=0,
            grid=(B, Nqp // tq, Nkp // tkv),
            in_specs=in_specs,
            out_specs=pl.BlockSpec((1, tq, Ep), lambda b, qi, ki: (b, qi, 0)),
            scratch_shapes=[
                pltpu.VMEM((H, tq, 1), jnp.float32),    # running max
                pltpu.VMEM((H, tq, 1), jnp.float32),    # running denominator
                pltpu.VMEM((H, tq, dh), jnp.float32),   # running numerator
            ],
        ),
        compiler_params=pltpu.CompilerParams(
            dimension_semantics=("parallel", "parallel", "arbitrary"),
            vmem_limit_bytes=_FLASH_VMEM_BYTES),
    )(*args)

    return out[:, :N, :E]


# ---------------------------------------------------------------------------
# Fused ffn first stage: Linear(2E->2E) on implicit concat([x, message]) + LN + GELU
# ---------------------------------------------------------------------------
def _ffn1_kernel(x_ref, m_ref, wx_ref, wm_ref, b_ref, g_ref, bb_ref, o_ref):
    h = jnp.dot(x_ref[...], wx_ref[...], preferred_element_type=jnp.float32)
    h = h + jnp.dot(m_ref[...], wm_ref[...], preferred_element_type=jnp.float32)
    h = h + b_ref[...]
    # LayerNorm (biased variance, eps=1e-5), computed in f32.
    mu = jnp.mean(h, axis=-1, keepdims=True)
    var = jnp.mean(jnp.square(h - mu), axis=-1, keepdims=True)
    hn = (h - mu) * jax.lax.rsqrt(var + 1e-5)
    hn = hn * g_ref[...] + bb_ref[...]
    # TODO(synk): torch nn.GELU() uses the exact erf form; use the tanh
    # approximation in-kernel (max abs deviation ~3e-3) for lowering robustness.
    o_ref[...] = jax.nn.gelu(hn, approximate=True).astype(o_ref.dtype)


def pallas_ffn1(x2d, msg2d, w1x_t, w1m_t, b1, gamma, beta, *, tm=256):
    """Fused ffn[0..2]: Linear on the implicit concat([x, message]) (weights
    split so no concat is materialized) + LayerNorm + GELU.  Returns bf16."""
    M, _ = x2d.shape
    E_in = x2d.shape[1]
    N2 = w1x_t.shape[1]

    x2d = x2d.astype(jnp.bfloat16)
    msg2d = msg2d.astype(jnp.bfloat16)
    w1x_t = w1x_t.astype(jnp.bfloat16)
    w1m_t = w1m_t.astype(jnp.bfloat16)

    tm = min(tm, _round_up(M, 8))
    Mp = _round_up(M, tm)
    if Mp != M:
        x2d = jnp.pad(x2d, ((0, Mp - M), (0, 0)))
        msg2d = jnp.pad(msg2d, ((0, Mp - M), (0, 0)))

    out = pl.pallas_call(
        _ffn1_kernel,
        out_shape=jax.ShapeDtypeStruct((Mp, N2), jnp.bfloat16),
        grid_spec=pltpu.PrefetchScalarGridSpec(
            num_scalar_prefetch=0,
            grid=(Mp // tm,),
            in_specs=[
                pl.BlockSpec((tm, E_in), lambda i: (i, 0)),
                pl.BlockSpec((tm, E_in), lambda i: (i, 0)),
                pl.BlockSpec((E_in, N2), lambda i: (0, 0)),   # resident weights
                pl.BlockSpec((E_in, N2), lambda i: (0, 0)),
                pl.BlockSpec((1, N2), lambda i: (0, 0)),
                pl.BlockSpec((1, N2), lambda i: (0, 0)),
                pl.BlockSpec((1, N2), lambda i: (0, 0)),
            ],
            out_specs=pl.BlockSpec((tm, N2), lambda i: (i, 0)),
        ),
        compiler_params=pltpu.CompilerParams(
            dimension_semantics=("parallel",),
            vmem_limit_bytes=_LINEAR_VMEM_BYTES),
    )(x2d, msg2d, w1x_t, w1m_t,
      b1.astype(jnp.float32).reshape(1, N2),
      gamma.astype(jnp.float32).reshape(1, N2),
      beta.astype(jnp.float32).reshape(1, N2))

    return out[:M] if Mp != M else out


# ---------------------------------------------------------------------------
# SelfAttention module (forward only)
# ---------------------------------------------------------------------------
def init_selfattention_params(key, embed_dim, num_heads):
    del num_heads
    E = embed_dim
    ks = jax.random.split(key, 10)
    return {
        # torch nn.Linear weight layout: (out_features, in_features)
        "wqkv": jax.random.normal(ks[0], (3 * E, E), jnp.float32) * 0.05,
        "bqkv": jax.random.normal(ks[1], (3 * E,), jnp.float32) * 0.05,
        "wo": jax.random.normal(ks[2], (E, E), jnp.float32) * 0.05,
        "bo": jax.random.normal(ks[3], (E,), jnp.float32) * 0.05,
        "w1": jax.random.normal(ks[4], (2 * E, 2 * E), jnp.float32) * 0.05,
        "b1": jax.random.normal(ks[5], (2 * E,), jnp.float32) * 0.05,
        "ln_g": 1.0 + 0.05 * jax.random.normal(ks[6], (2 * E,), jnp.float32),
        "ln_b": 0.05 * jax.random.normal(ks[7], (2 * E,), jnp.float32),
        "w2": jax.random.normal(ks[8], (E, 2 * E), jnp.float32) * 0.05,
        "b2": jax.random.normal(ks[9], (E,), jnp.float32) * 0.05,
    }


def self_attention_forward(params, x, num_heads, mask=None):
    """x: (B, N, E) f32; mask: (B, N) bool (True = attend) or None.
    Returns (B, N, E) f32.  (Fully-masked rows degenerate to uniform attention
    over the masked keys, matching torch masked_fill(-finfo.max) + softmax.)"""
    B, N, E = x.shape
    H = num_heads
    dh = E // H
    scale = dh ** (-0.5)
    Ep = _round_up(E, 128)          # lane-padded per-section width of the packed qkv
    M = B * N
    x2d = x.reshape(M, E)

    # --- host-side weight prep (one-time, no per-token cost) -----------------
    # Wqkv output column c corresponds to (head h, dim d, selector s) with
    # c = h*dh*3 + d*3 + s  (torch unflatten(-1,(H,dh,3)).transpose(1,2)).
    wqkv = params["wqkv"].reshape(H, dh, 3, E)
    bqkv = params["bqkv"].reshape(H, dh, 3)
    wq = wqkv[:, :, 0, :].reshape(E, E) * scale        # softmax scale folded in
    wk = wqkv[:, :, 1, :].reshape(E, E)
    wv = wqkv[:, :, 2, :].reshape(E, E)
    bq = bqkv[:, :, 0].reshape(E) * scale
    bk = bqkv[:, :, 1].reshape(E)
    bv = bqkv[:, :, 2].reshape(E)

    def pad_rows(w):
        return jnp.pad(w, ((0, Ep - E), (0, 0)))

    w_packed_t = jnp.concatenate([pad_rows(wq), pad_rows(wk), pad_rows(wv)],
                                 axis=0).T                       # (E, 3*Ep)
    b_packed = jnp.concatenate([jnp.pad(bq, (0, Ep - E)),
                                jnp.pad(bk, (0, Ep - E)),
                                jnp.pad(bv, (0, Ep - E))])        # (3*Ep,)

    # --- fused QKV projection (single x stream feeds q, k and v) -------------
    qkv = pallas_linear(x2d, w_packed_t, b_packed, out_dtype=jnp.bfloat16)
    qkv = qkv.reshape(B, N, 3 * Ep)

    # --- attention core: heads split/merged in VMEM, no HBM transpose --------
    ctx = pallas_flash_attention(qkv, mask, H=H, dh=dh, E=E, Ep=Ep)   # (B,N,E) bf16

    # --- out_proj -------------------------------------------------------------
    message = pallas_linear(ctx.reshape(M, E), params["wo"].T, params["bo"],
                            out_dtype=jnp.bfloat16)                   # (M, E)

    # --- ffn stage 1: Linear(2E->2E) on concat([x, message]) + LN + GELU -----
    w1x_t = params["w1"][:, :E].T       # (E, 2E)   acts on x
    w1m_t = params["w1"][:, E:].T       # (E, 2E)   acts on message
    hid = pallas_ffn1(x2d, message, w1x_t, w1m_t,
                      params["b1"], params["ln_g"], params["ln_b"])   # (M, 2E) bf16

    # --- ffn stage 2 + residual (residual fused into the matmul epilogue) ----
    y = pallas_linear(hid, params["w2"].T, params["b2"],
                      residual=x2d, out_dtype=jnp.float32)            # (M, E) f32
    return y.reshape(B, N, E)


# ---------------------------------------------------------------------------
# Pure-JAX reference (mirrors the torch module, f32, exact-erf GELU)
# ---------------------------------------------------------------------------
def self_attention_reference(params, x, num_heads, mask=None):
    B, N, E = x.shape
    H = num_heads
    dh = E // H
    scale = dh ** (-0.5)
    qkv = x @ params["wqkv"].T + params["bqkv"]                     # (B, N, 3E)
    qkv = qkv.reshape(B, N, H, dh, 3).transpose(0, 2, 1, 3, 4)       # (B, H, N, dh, 3)
    q, k, v = qkv[..., 0], qkv[..., 1], qkv[..., 2]
    sim = jnp.einsum("bhid,bhjd->bhij", q, k) * scale
    if mask is not None:
        sim = jnp.where(mask[:, None, None, :], sim, -jnp.finfo(sim.dtype).max)
    attn = jax.nn.softmax(sim, axis=-1)
    ctx = jnp.einsum("bhij,bhjd->bhid", attn, v)                     # (B, H, N, dh)
    ctx = ctx.transpose(0, 2, 1, 3).reshape(B, N, E)
    message = ctx @ params["wo"].T + params["bo"]
    hcat = jnp.concatenate([x, message], axis=-1)
    hidden = hcat @ params["w1"].T + params["b1"]
    mu = hidden.mean(-1, keepdims=True)
    var = ((hidden - mu) ** 2).mean(-1, keepdims=True)
    hidden = (hidden - mu) / jnp.sqrt(var + 1e-5)
    hidden = hidden * params["ln_g"] + params["ln_b"]
    hidden = jax.nn.gelu(hidden, approximate=False)   # torch nn.GELU default (erf)
    return x + hidden @ params["w2"].T + params["b2"]


if __name__ == "__main__":
    # small shapes consistent with the module
    B, N, E, H = 2, 8, 32, 4

    key = jax.random.PRNGKey(0)
    kx, kp, km = jax.random.split(key, 3)
    x = jax.random.normal(kx, (B, N, E), jnp.float32)
    params = init_selfattention_params(kp, E, H)
    mask = jax.random.bernoulli(km, 0.75, (B, N))
    mask = mask.at[:, 0].set(True)   # ensure at least one attendable key per batch

    # un-masked path (matches default call)
    y = self_attention_forward(params, x, H)
    y = jax.block_until_ready(y)
    y_ref = self_attention_reference(params, x, H)
    assert jnp.allclose(y, y_ref, atol=3e-2, rtol=3e-2), (
        f"no-mask mismatch, max|diff|={float(jnp.max(jnp.abs(y - y_ref)))}")

    # masked path
    ym = self_attention_forward(params, x, H, mask=mask)
    ym = jax.block_until_ready(ym)
    ym_ref = self_attention_reference(params, x, H, mask=mask)
    assert jnp.allclose(ym, ym_ref, atol=3e-2, rtol=3e-2), (
        f"mask mismatch, max|diff|={float(jnp.max(jnp.abs(ym - ym_ref)))}")

    print("KERNEL_OK")
</pallas_src>

<mosaic_0001>
module attributes {stable_mosaic.version = 11 : i64} {
  func.func @_linear_kernel(%arg0: i32, %arg1: i32, %arg2: i32, %arg3: memref<16x128xbf16, #tpu.memory_space<vmem>>, %arg4: memref<128x384xbf16, #tpu.memory_space<vmem>>, %arg5: memref<1x384xf32, #tpu.memory_space<vmem>>, %arg6: memref<16x384xbf16, #tpu.memory_space<vmem>>, %arg7: memref<16x384xf32, #tpu.memory_space<vmem>>) attributes {dimension_semantics = [#tpu.dimension_semantics<parallel>, #tpu.dimension_semantics<parallel>, #tpu.dimension_semantics<arbitrary>], iteration_bounds = array<i64: 1, 1, 1>, scalar_prefetch = 0 : i64, scratch_operands = 1 : i64, tpu.core_type = #tpu.core_type<tc>, window_params = [{transform_indices = @transform_0, window_bounds = array<i64: 16, 128>}, {transform_indices = @transform_1, window_bounds = array<i64: 128, 384>}, {transform_indices = @transform_2, window_bounds = array<i64: 1, 384>}, {transform_indices = @transform_3, window_bounds = array<i64: 16, 384>}]} {
    %c0_i32 = arith.constant 0 : i32
    %0 = arith.cmpi eq, %arg2, %c0_i32 : i32
    %1 = arith.extui %0 : i1 to i32
    %c0_i32_0 = arith.constant 0 : i32
    %2 = arith.cmpi ne, %1, %c0_i32_0 : i32
    scf.if %2 {
      %cst_10 = arith.constant 0.000000e+00 : f32
      %12 = vector.broadcast %cst_10 : f32 to vector<16x384xf32>
      %c0_11 = arith.constant 0 : index
      %c0_12 = arith.constant 0 : index
      %13 = vector.load %arg7[%c0_11, %c0_12] : memref<16x384xf32, #tpu.memory_space<vmem>>, vector<16x384xf32>
      tpu.vector_store %arg7[%c0_11, %c0_12], %12 {strides = array<i32>} : memref<16x384xf32, #tpu.memory_space<vmem>>, vector<16x384xf32>,
    } else {
    }
    %c0 = arith.constant 0 : index
    %c0_1 = arith.constant 0 : index
    %3 = vector.load %arg7[%c0, %c0_1] : memref<16x384xf32, #tpu.memory_space<vmem>>, vector<16x384xf32>
    %c0_2 = arith.constant 0 : index
    %c0_3 = arith.constant 0 : index
    %4 = vector.load %arg3[%c0_2, %c0_3] : memref<16x128xbf16, #tpu.memory_space<vmem>>, vector<16x128xbf16>
    %c0_4 = arith.constant 0 : index
    %c0_5 = arith.constant 0 : index
    %5 = vector.load %arg4[%c0_4, %c0_5] : memref<128x384xbf16, #tpu.memory_space<vmem>>, vector<128x384xbf16>
    %cst = arith.constant dense<0.000000e+00> : vector<16x384xf32>
    %6 = tpu.matmul %4, %5, %cst {dimension_numbers = #tpu.dot_dimension_numbers<[1], [0], [0], [1], [0, 0, 1, 1], [], []>} : vector<16x128xbf16>, vector<128x384xbf16>, vector<16x384xf32> -> vector<16x384xf32>
    %7 = arith.addf %3, %6 : vector<16x384xf32>
    %c0_6 = arith.constant 0 : index
    %c0_7 = arith.constant 0 : index
    %8 = vector.load %arg7[%c0_6, %c0_7] : memref<16x384xf32, #tpu.memory_space<vmem>>, vector<16x384xf32>
    tpu.vector_store %arg7[%c0_6, %c0_7], %7 {strides = array<i32>} : memref<16x384xf32, #tpu.memory_space<vmem>>, vector<16x384xf32>,
    %c0_i32_8 = arith.constant 0 : i32
    %9 = arith.cmpi eq, %arg2, %c0_i32_8 : i32
    %10 = arith.extui %9 : i1 to i32
    %c0_i32_9 = arith.constant 0 : i32
    %11 = arith.cmpi ne, %10, %c0_i32_9 : i32
    scf.if %11 {
      %c0_10 = arith.constant 0 : index
      %c0_11 = arith.constant 0 : index
      %12 = vector.load %arg7[%c0_10, %c0_11] : memref<16x384xf32, #tpu.memory_space<vmem>>, vector<16x384xf32>
      %c0_12 = arith.constant 0 : index
      %c0_13 = arith.constant 0 : index
      %13 = vector.load %arg5[%c0_12, %c0_13] : memref<1x384xf32, #tpu.memory_space<vmem>>, vector<1x384xf32>
      %14 = vector.broadcast %13 : vector<1x384xf32> to vector<16x384xf32>
      %15 = arith.addf %12, %14 : vector<16x384xf32>
      %16 = arith.truncf %15 : vector<16x384xf32> to vector<16x384xbf16>
      %c0_14 = arith.constant 0 : index
      %c0_15 = arith.constant 0 : index
      %17 = vector.load %arg6[%c0_14, %c0_15] : memref<16x384xbf16, #tpu.memory_space<vmem>>, vector<16x384xbf16>
      tpu.vector_store %arg6[%c0_14, %c0_15], %16 {strides = array<i32>} : memref<16x384xbf16, #tpu.memory_space<vmem>>, vector<16x384xbf16>,
    } else {
    }
    return
  }
  func.func @transform_0(%arg0: i32, %arg1: i32, %arg2: i32) -> (i32, i32) {
    %c0_i32 = arith.constant 0 : i32
    return %arg0, %arg2 : i32, i32
  }
  func.func @transform_1(%arg0: i32, %arg1: i32, %arg2: i32) -> (i32, i32) {
    %c0_i32 = arith.constant 0 : i32
    return %arg2, %arg1 : i32, i32
  }
  func.func @transform_2(%arg0: i32, %arg1: i32, %arg2: i32) -> (i32, i32) {
    %c0_i32 = arith.constant 0 : i32
    %c0_i32_0 = arith.constant 0 : i32
    return %c0_i32, %arg1 : i32, i32
  }
  func.func @transform_3(%arg0: i32, %arg1: i32, %arg2: i32) -> (i32, i32) {
    %c0_i32 = arith.constant 0 : i32
    return %arg0, %arg1 : i32, i32
  }
}

</mosaic_0001>

<llo_original>
// kernel: tpu_custom_call.1
$region0: #{tpu_custom_call.1}
  #allocation0 [shape = 'u32[]', space=smem, size = 0x4, offset = 0x4, fixed_abs, tag = 'smem constant byte address 0x4 - core index']
  #allocation1 [shape = 'u32[144,128]{1,0:T(1,128)}', space=vmem, size = 0x12000, scoped, tag = 'internal scratch']
  #allocation2 [shape = 'f32[16,384]{1,0:T(8,128)}', space=vmem, size = 0x6000, scoped, tag = 'scratch operand']
  %s0 = inlined_call_operand.hbm [shape: bf16[16,128], index: 0, kind: input, shape index: {}]
  %s1 = inlined_call_operand.hbm [shape: bf16[128,384], index: 1, kind: input, shape index: {}]
  %s2 = inlined_call_operand.vmem [shape: f32[1,384], index: 2, kind: input, shape index: {}]
  %s3 = inlined_call_operand.hbm [shape: bf16[16,384], index: 3, kind: output, shape index: {}]
  %s4 = sld [smem:[#allocation0]]
  $region38: #{tpu_custom_call.1} parent=0
    _
  %s6 = ssub.s32 1, %s4
  %s7 = scalar_select 0, %s6, %s4
  $region1: #{tpu_custom_call.1} parent=0
    #allocation3 [shape = 'u8[4096]{0}', space=vmem, size = 0x1000, scoped, tag = 'input window, operand 0, single buffered']
    #allocation4 [shape = 's32[1]{0}', space=sflag, size = 0x4, scoped, tag = 'scoped memory for tpu_custom_call.1']
    #allocation5 [shape = 's32[1]{0}', space=sflag, size = 0x4, scoped, tag = 'scoped memory for tpu_custom_call.1']
    #allocation6 [shape = 'u8[98304]{0}', space=vmem, size = 0x18000, scoped, tag = 'input window, operand 1, single buffered']
    #allocation7 [shape = 's32[1]{0}', space=sflag, size = 0x4, scoped, tag = 'scoped memory for tpu_custom_call.1']
    #allocation8 [shape = 'u8[12288]{0}', space=vmem, size = 0x3000, scoped, tag = 'output window, operand 0, single buffered']
    %8 = vsyncpa [#allocation4], 0
    %9 = vsyncpa [#allocation7], 0
    %10 = vsyncpa [#allocation5], 0
    // Predicated region
    $region2: #{tpu_custom_call.1} parent=1 // pred_check
      _
    $region3: #{tpu_custom_call.1} parent=1 // pred_check_branch
      %12 = sbr.rel (0) target = $region5
    $region4: #{tpu_custom_call.1} parent=1 // pred_region
      %s14 = ssub.s32 128, 128
      %15 = vsyncadd [#allocation4], %s14
      %s16 = sshll.u32 [#allocation3], 4
      %s17 = int_to_ptr.vmem [resolvable:$true] %s16
      %22 = dma.hbm_to_vmem [thread:$0]  %s0, 128, %s17, [#allocation4], 64, 64, 4
    $region5: #{tpu_custom_call.1} parent=1 // pred_fallthru
      _
    // Predicated region
    $region6: #{tpu_custom_call.1} parent=1 // pred_check
      _
    $region7: #{tpu_custom_call.1} parent=1 // pred_check_branch
      %24 = sbr.rel (0) target = $region9
    $region8: #{tpu_custom_call.1} parent=1 // pred_region
      %s26 = ssub.s32 3072, 3072
      %27 = vsyncadd [#allocation7], %s26
      %s28 = sshll.u32 [#allocation6], 4
      %s29 = int_to_ptr.vmem [resolvable:$true] %s28
      %34 = dma.hbm_to_vmem [thread:$0]  %s1, 3072, %s29, [#allocation7], 192, 192, 12
    $region9: #{tpu_custom_call.1} parent=1 // pred_fallthru
      _
    // Predicated region
    $region10: #{tpu_custom_call.1} parent=1 // pred_check
      _
    $region11: #{tpu_custom_call.1} parent=1 // pred_check_branch
      %36 = sbr.rel (0) target = $region13
    $region12: #{tpu_custom_call.1} parent=1 // pred_region
      _
    $region13: #{tpu_custom_call.1} parent=1 // pred_fallthru
      _
    // Predicated region
    $region14: #{tpu_custom_call.1} parent=1 // pred_check
      _
    $region15: #{tpu_custom_call.1} parent=1 // pred_check_branch
      %38 = sbr.rel (0) target = $region17
    $region16: #{tpu_custom_call.1} parent=1 // pred_region
      %39 = dma.done [#allocation4], 128
    $region17: #{tpu_custom_call.1} parent=1 // pred_fallthru
      _
    // Predicated region
    $region18: #{tpu_custom_call.1} parent=1 // pred_check
      _
    $region19: #{tpu_custom_call.1} parent=1 // pred_check_branch
      %41 = sbr.rel (0) target = $region21
    $region20: #{tpu_custom_call.1} parent=1 // pred_region
      %42 = dma.done [#allocation7], 3072
    $region21: #{tpu_custom_call.1} parent=1 // pred_fallthru
      _
    %p44 = scmp.eq.s32.totalorder 0, 0
    // Predicated region
    $region22: #{tpu_custom_call.1} parent=1 // pred_check
      %p45 = pneg %p44
    $region23: #{tpu_custom_call.1} parent=1 // pred_check_branch
      %47 = sbr.rel (%p45) target = $region25
    $region24: #{tpu_custom_call.1} parent=1 // pred_region
      %48 = vst [vmem:[#allocation2] sm:$0xff] 0.0
      %49 = vst [vmem:[#allocation2 + $0x8] sm:$0xff] 0.0
      %50 = vst [vmem:[#allocation2 + $0x10] sm:$0xff] 0.0
      %51 = vst [vmem:[#allocation2 + $0x18] sm:$0xff] 0.0
      %52 = vst [vmem:[#allocation2 + $0x20] sm:$0xff] 0.0
      %53 = vst [vmem:[#allocation2 + $0x28] sm:$0xff] 0.0
    $region25: #{tpu_custom_call.1} parent=1 // pred_fallthru
      _
    %v54 = vld [vmem:[#allocation2] sm:$0xff]
    %v55 = vld [vmem:[#allocation2 + $0x8] sm:$0xff]
    %v56 = vld [vmem:[#allocation2 + $0x10] sm:$0xff]
    %v57 = vld [vmem:[#allocation2 + $0x18] sm:$0xff]
    %v58 = vld [vmem:[#allocation2 + $0x20] sm:$0xff]
    %v59 = vld [vmem:[#allocation2 + $0x28] sm:$0xff]
    %v60 = vld [vmem:[#allocation3] sm:$0xf]
    %v61 = vld [vmem:[#allocation3 + $0x4] sm:$0xf]
    %v62 = vld [vmem:[#allocation6] sm:$0xff]
    %v63 = vld [vmem:[#allocation6 + $0x8] sm:$0xf]
    %v64 = vld [vmem:[#allocation6 + $0xc] sm:$0xff]
    %v65 = vld [vmem:[#allocation6 + $0x14] sm:$0xf]
    %v66 = vld [vmem:[#allocation6 + $0x18] sm:$0xff]
    %v67 = vld [vmem:[#allocation6 + $0x20] sm:$0xf]
    %v68 = vld [vmem:[#allocation6 + $0x24] sm:$0xff]
    %v69 = vld [vmem:[#allocation6 + $0x2c] sm:$0xf]
    %v70 = vld [vmem:[#allocation6 + $0x30] sm:$0xff]
    %v71 = vld [vmem:[#allocation6 + $0x38] sm:$0xf]
    %v72 = vld [vmem:[#allocation6 + $0x3c] sm:$0xff]
    %v73 = vld [vmem:[#allocation6 + $0x44] sm:$0xf]
    %v74 = vld [vmem:[#allocation6 + $0x48] sm:$0xff]
    %v75 = vld [vmem:[#allocation6 + $0x50] sm:$0xf]
    %v76 = vld [vmem:[#allocation6 + $0x54] sm:$0xff]
    %v77 = vld [vmem:[#allocation6 + $0x5c] sm:$0xf]
    %v78 = vld [vmem:[#allocation6 + $0x60] sm:$0xff]
    %v79 = vld [vmem:[#allocation6 + $0x68] sm:$0xf]
    %v80 = vld [vmem:[#allocation6 + $0x6c] sm:$0xff]
    %v81 = vld [vmem:[#allocation6 + $0x74] sm:$0xf]
    %v82 = vld [vmem:[#allocation6 + $0x78] sm:$0xff]
    %v83 = vld [vmem:[#allocation6 + $0x80] sm:$0xf]
    %v84 = vld [vmem:[#allocation6 + $0x84] sm:$0xff]
    %v85 = vld [vmem:[#allocation6 + $0x8c] sm:$0xf]
    %v86 = vld [vmem:[#allocation6 + $0x90] sm:$0xff]
    %v87 = vld [vmem:[#allocation6 + $0x98] sm:$0xf]
    %v88 = vld [vmem:[#allocation6 + $0x9c] sm:$0xff]
    %v89 = vld [vmem:[#allocation6 + $0xa4] sm:$0xf]
    %v90 = vld [vmem:[#allocation6 + $0xa8] sm:$0xff]
    %v91 = vld [vmem:[#allocation6 + $0xb0] sm:$0xf]
    %v92 = vld [vmem:[#allocation6 + $0xb4] sm:$0xff]
    %v93 = vld [vmem:[#allocation6 + $0xbc] sm:$0xf]
    %v96 = vunpack.c.l.b16 %v60
    %v97 = vunpack.c.l.b16 %v61
    %v98 = vpack.c.b16 %v97, %v96
    %v132 = vunpack.c.l.b16 %v62
    %v133 = vunpack.c.h.b16 %v62
    %v134 = vunpack.c.l.b16 %v63
    %v135 = vunpack.c.l.b16 %v64
    %v136 = vunpack.c.h.b16 %v64
    %v137 = vunpack.c.l.b16 %v65
    %v138 = vunpack.c.l.b16 %v66
    %v139 = vunpack.c.h.b16 %v66
    %v140 = vunpack.c.l.b16 %v67
    %v141 = vunpack.c.l.b16 %v68
    %v142 = vunpack.c.h.b16 %v68
    %v143 = vunpack.c.l.b16 %v69
    %v144 = vunpack.c.l.b16 %v70
    %v145 = vunpack.c.h.b16 %v70
    %v146 = vunpack.c.l.b16 %v71
    %v147 = vunpack.c.l.b16 %v72
    %v148 = vunpack.c.h.b16 %v72
    %v149 = vunpack.c.l.b16 %v73
    %v150 = vunpack.c.l.b16 %v74
    %v151 = vunpack.c.h.b16 %v74
    %v152 = vunpack.c.l.b16 %v75
    %v153 = vunpack.c.l.b16 %v76
    %v154 = vunpack.c.h.b16 %v76
    %v155 = vunpack.c.l.b16 %v77
    %v156 = vunpack.c.l.b16 %v78
    %v157 = vunpack.c.h.b16 %v78
    %v158 = vunpack.c.l.b16 %v79
    %v159 = vunpack.c.l.b16 %v80
    %v160 = vunpack.c.h.b16 %v80
    %v161 = vunpack.c.l.b16 %v81
    %v162 = vunpack.c.l.b16 %v82
    %v163 = vunpack.c.h.b16 %v82
    %v164 = vunpack.c.l.b16 %v83
    %v165 = vunpack.c.l.b16 %v84
    %v166 = vunpack.c.h.b16 %v84
    %v167 = vunpack.c.l.b16 %v85
    %v168 = vunpack.c.l.b16 %v86
    %v169 = vunpack.c.h.b16 %v86
    %v170 = vunpack.c.l.b16 %v87
    %v171 = vunpack.c.l.b16 %v88
    %v172 = vunpack.c.h.b16 %v88
    %v173 = vunpack.c.l.b16 %v89
    %v174 = vunpack.c.l.b16 %v90
    %v175 = vunpack.c.h.b16 %v90
    %v176 = vunpack.c.l.b16 %v91
    %v177 = vunpack.c.l.b16 %v92
    %v178 = vunpack.c.h.b16 %v92
    %v179 = vunpack.c.l.b16 %v93
    %v180 = vpack.c.b16 %v135, %v132
    %v181 = vpack.c.b16 %v136, %v133
    %v182 = vpack.c.b16 %v137, %v134
    %v183 = vpack.c.b16 %v141, %v138
    %v184 = vpack.c.b16 %v142, %v139
    %v185 = vpack.c.b16 %v143, %v140
    %v186 = vpack.c.b16 %v147, %v144
    %v187 = vpack.c.b16 %v148, %v145
    %v188 = vpack.c.b16 %v149, %v146
    %v189 = vpack.c.b16 %v153, %v150
    %v190 = vpack.c.b16 %v154, %v151
    %v191 = vpack.c.b16 %v155, %v152
    %v192 = vpack.c.b16 %v159, %v156
    %v193 = vpack.c.b16 %v160, %v157
    %v194 = vpack.c.b16 %v161, %v158
    %v195 = vpack.c.b16 %v165, %v162
    %v196 = vpack.c.b16 %v166, %v163
    %v197 = vpack.c.b16 %v167, %v164
    %v198 = vpack.c.b16 %v171, %v168
    %v199 = vpack.c.b16 %v172, %v169
    %v200 = vpack.c.b16 %v173, %v170
    %v201 = vpack.c.b16 %v177, %v174
    %v202 = vpack.c.b16 %v178, %v175
    %v203 = vpack.c.b16 %v179, %v176
    %228 = vmatprep.subr.bf16.mxu0 %v181
    %229 = vmatpush1.bf16.msra.mxu0 %v180
    %230 = vmatprep.subr.bf16.mxu0 %v184
    %231 = vmatpush1.bf16.msra.mxu0 %v183
    %232 = vmatprep.subr.bf16.mxu0 %v187
    %233 = vmatpush1.bf16.msra.mxu0 %v186
    %234 = vmatprep.subr.bf16.mxu0 %v190
    %235 = vmatpush1.bf16.msra.mxu0 %v189
    %236 = vmatprep.subr.bf16.mxu0 %v193
    %237 = vmatpush1.bf16.msra.mxu0 %v192
    %238 = vmatprep.subr.bf16.mxu0 %v196
    %239 = vmatpush1.bf16.msra.mxu0 %v195
    %240 = vmatprep.subr.bf16.mxu0 %v199
    %241 = vmatpush1.bf16.msra.mxu0 %v198
    %242 = vmatprep.subr.bf16.mxu0 %v202
    %243 = vmatpush1.bf16.msra.mxu0 %v201
    %244 = vmatprep.subr.bf16.mxu0 0
    %245 = vmatpush1.bf16.msra.mxu0 0
    %246 = vmatprep.subr.bf16.mxu0 0
    %247 = vmatpush1.bf16.msra.mxu0 0
    %248 = vmatprep.subr.bf16.mxu0 0
    %249 = vmatpush1.bf16.msra.mxu0 0
    %250 = vmatprep.subr.bf16.mxu0 0
    %251 = vmatpush1.bf16.msra.mxu0 0
    %252 = vmatprep.subr.bf16.mxu0 0
    %253 = vmatpush1.bf16.msra.mxu0 0
    %254 = vmatprep.subr.bf16.mxu0 0
    %255 = vmatpush1.bf16.msra.mxu0 0
    %256 = vmatprep.subr.bf16.mxu0 0
    %257 = vmatpush1.bf16.msra.mxu0 0
    %258 = vmatprep.subr.bf16.mxu0 0
    %259 = vmatpush1.bf16.msra.mxu0 0
    %260 = vmatprep.mubr.bf16.mxu0 0
    %261 = vmatmul.mubr.bf16.gmra.mrb[0].mxu0 %v98
    %v262 = vpop.f32.mrb[0].mxu0
    %v263 = vadd.f32 0.0, %v262
    %v264 = vpop.f32.mrb[0].mxu0
    %v265 = vadd.f32 0.0, %v264
    %v266 = vpop.f32.mrb[0].mxu0
    %v267 = vadd.f32 0.0, %v266
    %v268 = vpop.f32.mrb[0].mxu0
    %v269 = vadd.f32 0.0, %v268
    %270 = vdwg.mxu0
    %271 = vmatprep.subr.bf16.mxu0 0
    %272 = vmatpush1.bf16.msra.mxu0 %v182
    %273 = vmatprep.subr.bf16.mxu0 0
    %274 = vmatpush1.bf16.msra.mxu0 %v185
    %275 = vmatprep.subr.bf16.mxu0 0
    %276 = vmatpush1.bf16.msra.mxu0 %v188
    %277 = vmatprep.subr.bf16.mxu0 0
    %278 = vmatpush1.bf16.msra.mxu0 %v191
    %279 = vmatprep.subr.bf16.mxu0 0
    %280 = vmatpush1.bf16.msra.mxu0 %v194
    %281 = vmatprep.subr.bf16.mxu0 0
    %282 = vmatpush1.bf16.msra.mxu0 %v197
    %283 = vmatprep.subr.bf16.mxu0 0
    %284 = vmatpush1.bf16.msra.mxu0 %v200
    %285 = vmatprep.subr.bf16.mxu0 0
    %286 = vmatpush1.bf16.msra.mxu0 %v203
    %287 = vmatprep.subr.bf16.mxu0 0
    %288 = vmatpush1.bf16.msra.mxu0 0
    %289 = vmatprep.subr.bf16.mxu0 0
    %290 = vmatpush1.bf16.msra.mxu0 0
    %291 = vmatprep.subr.bf16.mxu0 0
    %292 = vmatpush1.bf16.msra.mxu0 0
    %293 = vmatprep.subr.bf16.mxu0 0
    %294 = vmatpush1.bf16.msra.mxu0 0
    %295 = vmatprep.subr.bf16.mxu0 0
    %296 = vmatpush1.bf16.msra.mxu0 0
    %297 = vmatprep.subr.bf16.mxu0 0
    %298 = vmatpush1.bf16.msra.mxu0 0
    %299 = vmatprep.subr.bf16.mxu0 0
    %300 = vmatpush1.bf16.msra.mxu0 0
    %301 = vmatprep.subr.bf16.mxu0 0
    %302 = vmatpush1.bf16.msra.mxu0 0
    %303 = vmatprep.mubr.bf16.mxu0 0
    %304 = vmatmul.mubr.bf16.gmra.mrb[0].mxu0 %v98
    %v305 = vpop.f32.mrb[0].mxu0
    %v306 = vadd.f32 0.0, %v305
    %v307 = vpop.f32.mrb[0].mxu0
    %v308 = vpop.f32.mrb[0].mxu0
    %v309 = vadd.f32 0.0, %v308
    %v310 = vpop.f32.mrb[0].mxu0
    %311 = vdwg.mxu0
    %v312 = vadd.f32 %v54, %v263
    %v313 = vadd.f32 %v55, %v265
    %v314 = vadd.f32 %v56, %v306
    %v315 = vadd.f32 %v57, %v267
    %v316 = vadd.f32 %v58, %v269
    %v317 = vadd.f32 %v59, %v309
    %318 = vst [vmem:[#allocation2] sm:$0xff] %v312
    %319 = vst [vmem:[#allocation2 + $0x8] sm:$0xff] %v313
    %320 = vst [vmem:[#allocation2 + $0x10] sm:$0xff] %v314
    %321 = vst [vmem:[#allocation2 + $0x18] sm:$0xff] %v315
    %322 = vst [vmem:[#allocation2 + $0x20] sm:$0xff] %v316
    %323 = vst [vmem:[#allocation2 + $0x28] sm:$0xff] %v317
    // Predicated region
    $region26: #{tpu_custom_call.1} parent=1 // pred_check
      %p324 = pneg %p44
    $region27: #{tpu_custom_call.1} parent=1 // pred_check_branch
      %326 = sbr.rel (%p324) target = $region29
    $region28: #{tpu_custom_call.1} parent=1 // pred_region
      %v327 = vld [vmem:[#allocation2] sm:$0xff]
      %v328 = vld [vmem:[#allocation2 + $0x8] sm:$0xff]
      %v329 = vld [vmem:[#allocation2 + $0x10] sm:$0xff]
      %v330 = vld [vmem:[#allocation2 + $0x18] sm:$0xff]
      %v331 = vld [vmem:[#allocation2 + $0x20] sm:$0xff]
      %v332 = vld [vmem:[#allocation2 + $0x28] sm:$0xff]
      %v333 = vld [vmem:[%s2] sm:$0x7]
      %v335 = vlaneseq
      %v336 = vshrl.u32 %v335, 7
      %v337 = vsub.s32 0, %v336
      %v338 = vrot.slane %v333, %v337
      %v339 = vlaneseq
      %v340 = vshrl.u32 %v339, 7
      %v341 = vsub.s32 1, %v340
      %v342 = vrot.slane %v333, %v341
      %v343 = vlaneseq
      %v344 = vshrl.u32 %v343, 7
      %v345 = vsub.s32 2, %v344
      %v346 = vrot.slane %v333, %v345
      %v350 = vadd.f32 %v327, %v338
      %v351 = vadd.f32 %v328, %v342
      %v352 = vadd.f32 %v329, %v346
      %v353 = vadd.f32 %v330, %v338
      %v354 = vadd.f32 %v331, %v342
      %v355 = vadd.f32 %v332, %v346
      %v356 = vpack.c.bf16 %v353, %v350
      %v357 = vpack.c.bf16 %v354, %v351
      %v358 = vpack.c.bf16 %v355, %v352
      %v362 = vunpack.c.l.b16 %v356
      %v363 = vunpack.c.l.b16 %v357
      %v364 = vunpack.c.l.b16 %v358
      %v365 = vunpack.c.h.b16 %v356
      %v366 = vunpack.c.h.b16 %v357
      %v367 = vunpack.c.h.b16 %v358
      %v368 = vpack.c.b16 %v363, %v362
      %v369 = vpack.c.b16 %v364, %v364
      %v370 = vpack.c.b16 %v366, %v365
      %v371 = vpack.c.b16 %v367, %v367
      %376 = vst [vmem:[#allocation8] sm:$0xff] %v368
      %377 = vst [vmem:[#allocation8 + $0x8] sm:$0xf] %v369
      %378 = vst [vmem:[#allocation8 + $0xc] sm:$0xff] %v370
      %379 = vst [vmem:[#allocation8 + $0x14] sm:$0xf] %v371
    $region29: #{tpu_custom_call.1} parent=1 // pred_fallthru
      _
    // Predicated region
    $region30: #{tpu_custom_call.1} parent=1 // pred_check
      _
    $region31: #{tpu_custom_call.1} parent=1 // pred_check_branch
      %381 = sbr.rel (0) target = $region33
    $region32: #{tpu_custom_call.1} parent=1 // pred_region
      %s383 = ssub.s32 384, 384
      %384 = vsyncadd [#allocation5], %s383
      %s385 = sshll.u32 [#allocation8], 4
      %s386 = int_to_ptr.vmem [resolvable:$true] %s385
      %391 = dma.vmem_to_hbm [thread:$0]  %s386, 384, %s3, [#allocation5], 192, 192, 12
    $region33: #{tpu_custom_call.1} parent=1 // pred_fallthru
      _
    // Predicated region
    $region34: #{tpu_custom_call.1} parent=1 // pred_check
      _
    $region35: #{tpu_custom_call.1} parent=1 // pred_check_branch
      %393 = sbr.rel (0) target = $region37
    $region36: #{tpu_custom_call.1} parent=1 // pred_region
      %394 = dma.done [#allocation5], 384
    $region37: #{tpu_custom_call.1} parent=1 // pred_fallthru
      _
    %395 = vsyncpa [#allocation4], 1
    %396 = vsyncpa [#allocation7], 1
    %397 = vsyncpa [#allocation5], 1

</llo_original>
